<compile_context>
chip_gen: v6e
topology: v6e:2x2x1
jax: 0.10.0
libtpu: 0.0.40
codegen_flags: <defaults>
</compile_context>

<pallas_src>
import math

import numpy as np
import jax
import jax.numpy as jnp
from jax.experimental import pallas as pl
from jax.experimental.pallas import tpu as pltpu


def _round_up(v, m):
    return (v + m - 1) // m * m


def _pad_to(a, shape):
    return jnp.pad(a, [(0, s - d) for d, s in zip(a.shape, shape)])


def _rgcn_kernel(tile_rel_ref,                      # scalar prefetch (SMEM), unused in body
                 x_ref, src_ref, tgt_ref, norm_ref, w_ref, root_ref, bias_ref,
                 out_ref):
    t = pl.program_id(0)
    n_pad = x_ref.shape[0]
    te = src_ref.shape[0]

    # Root + bias term, computed once; out block is resident across the grid.
    @pl.when(t == 0)
    def _init():
        out_ref[...] = (
            jnp.dot(x_ref[...], root_ref[...], preferred_element_type=jnp.float32)
            + bias_ref[...])

    # Gather source-node features for this (relation-homogeneous) edge tile:
    #   onehot_src[e, n] = (src[e] == n);  x_j = onehot_src @ x  -> [TE, Cin]
    edge_iota = jax.lax.broadcasted_iota(jnp.int32, (te, n_pad), 1)
    onehot_src = (src_ref[...] == edge_iota).astype(jnp.float32)          # [TE, N]
    x_j = jnp.dot(onehot_src, x_ref[...], preferred_element_type=jnp.float32)

    # Per-edge messages: this tile's relation weight was selected by the
    # scalar-prefetched index_map, so a single un-masked matmul suffices.
    msg = jnp.dot(x_j, w_ref[0], preferred_element_type=jnp.float32)      # [TE, Cout]

    # Scatter-add to target nodes.  edge_norm (and the zero padding mask) is
    # folded into the scatter matrix:  scatter[n, e] = norm[e] * (tgt[e] == n).
    node_iota = jax.lax.broadcasted_iota(jnp.int32, (n_pad, te), 0)
    scatter = jnp.where(node_iota == tgt_ref[...], norm_ref[...], 0.0)    # [N, TE]
    out_ref[...] += jnp.dot(scatter, msg, preferred_element_type=jnp.float32)


def rgcn_conv(x, edge_index, edge_type, basis, att, root, bias,
              edge_norm=None, edge_tile=128):
    """RGCNConv forward. x:[N,Cin] f32, edge_index:[2,E] int, edge_type:[E] int."""
    N, Cin = x.shape
    R, B = att.shape
    Cout = basis.shape[-1]
    E = edge_index.shape[1]
    TE = edge_tile

    hp = jax.lax.Precision.HIGHEST
    # Tiny parameter glue in plain JAX: combine bases into per-relation weights.
    w_all = jnp.matmul(att, basis.reshape(B, Cin * Cout),
                       precision=hp).reshape(R, Cin, Cout)

    # ---- host-side edge preprocessing: group by relation, pad to edge tiles ----
    src_np = np.asarray(edge_index[0], dtype=np.int32)
    tgt_np = np.asarray(edge_index[1], dtype=np.int32)
    et_np = np.asarray(edge_type, dtype=np.int32)
    norm_np = (np.ones(E, np.float32) if edge_norm is None
               else np.asarray(edge_norm, dtype=np.float32))

    src_g, tgt_g, norm_g, tile_rel = [], [], [], []
    for r in range(R):
        idx = np.nonzero(et_np == r)[0]
        if idx.size == 0:
            continue                      # relations with no edges get no tiles
        n_tiles_r = -(-idx.size // TE)
        pad = n_tiles_r * TE - idx.size
        src_g.append(np.pad(src_np[idx], (0, pad)))      # padded edges: src=0
        tgt_g.append(np.pad(tgt_np[idx], (0, pad)))      #               tgt=0
        norm_g.append(np.pad(norm_np[idx], (0, pad)))    #               norm=0 -> no contribution
        tile_rel.extend([r] * n_tiles_r)
    if not tile_rel:                      # graph with no edges: one dummy tile
        src_g = [np.zeros(TE, np.int32)]
        tgt_g = [np.zeros(TE, np.int32)]
        norm_g = [np.zeros(TE, np.float32)]
        tile_rel = [0]

    src_s = np.concatenate(src_g).astype(np.int32)
    tgt_s = np.concatenate(tgt_g).astype(np.int32)
    norm_s = np.concatenate(norm_g).astype(np.float32)
    num_tiles = len(tile_rel)
    e_pad = num_tiles * TE

    # ---- pad channels / nodes to TPU-friendly (lane/sublane dense) shapes ----
    n_p = _round_up(N, 8)
    cin_p = _round_up(Cin, 128)
    cout_p = _round_up(Cout, 128)

    x_p = _pad_to(x.astype(jnp.float32), (n_p, cin_p))
    w_p = _pad_to(w_all.astype(jnp.float32), (R, cin_p, cout_p))
    root_p = _pad_to(root.astype(jnp.float32), (cin_p, cout_p))
    bias_p = _pad_to(bias.astype(jnp.float32).reshape(1, Cout), (1, cout_p))

    tile_rel_a = jnp.asarray(tile_rel, dtype=jnp.int32)        # scalar-prefetch (SMEM)
    src_a = jnp.asarray(src_s).reshape(e_pad, 1)               # column: builds [TE, N] one-hot
    tgt_a = jnp.asarray(tgt_s).reshape(1, e_pad)               # row: builds [N, TE] scatter
    norm_a = jnp.asarray(norm_s).reshape(1, e_pad)

    out_p = pl.pallas_call(
        _rgcn_kernel,
        out_shape=jax.ShapeDtypeStruct((n_p, cout_p), jnp.float32),
        grid_spec=pltpu.PrefetchScalarGridSpec(
            num_scalar_prefetch=1,
            grid=(num_tiles,),
            in_specs=[
                pl.BlockSpec((n_p, cin_p), lambda t, rel: (0, 0)),               # x (resident)
                pl.BlockSpec((TE, 1), lambda t, rel: (t, 0)),                    # src column
                pl.BlockSpec((1, TE), lambda t, rel: (0, t)),                    # tgt row
                pl.BlockSpec((1, TE), lambda t, rel: (0, t)),                    # norm row
                pl.BlockSpec((1, cin_p, cout_p), lambda t, rel: (rel[t], 0, 0)), # W_{rel(tile)}
                pl.BlockSpec((cin_p, cout_p), lambda t, rel: (0, 0)),            # root
                pl.BlockSpec((1, cout_p), lambda t, rel: (0, 0)),                # bias
            ],
            out_specs=pl.BlockSpec((n_p, cout_p), lambda t, rel: (0, 0)),
        ),
        compiler_params=pltpu.CompilerParams(
            dimension_semantics=("arbitrary",),   # out block accumulates across edge tiles
            vmem_limit_bytes=48 << 20,            # fits v7x's 64 MiB physical VMEM too
        ),
    )(tile_rel_a, x_p, src_a, tgt_a, norm_a, w_p, root_p, bias_p)

    return out_p[:N, :Cout]


def rgcn_conv_ref(x, edge_index, edge_type, basis, att, root, bias, edge_norm=None):
    """Pure-JAX reference (mirrors the PyTorch module), high-precision matmuls."""
    hp = jax.lax.Precision.HIGHEST
    R, B = att.shape
    N, Cin = x.shape
    Cout = basis.shape[-1]
    w = jnp.matmul(att, basis.reshape(B, -1), precision=hp).reshape(R, Cin, Cout)
    w_e = w[edge_type]                                       # [E, Cin, Cout]
    x_j = x[edge_index[0]]                                   # [E, Cin]
    msg = jnp.einsum('ec,eco->eo', x_j, w_e, precision=hp)   # [E, Cout]
    if edge_norm is not None:
        msg = msg * edge_norm[:, None]
    aggr = jnp.zeros((N, Cout), jnp.float32).at[edge_index[1]].add(msg)
    return aggr + jnp.matmul(x, root, precision=hp) + bias[None, :]


if __name__ == "__main__":
    # Small, deterministic problem.
    N, Cin, Cout = 8, 32, 32
    R, B, E = 4, 2, 16

    key = jax.random.PRNGKey(0)
    k_x, k_basis, k_att, k_root, k_bias, k_src, k_tgt, k_et, k_norm = \
        jax.random.split(key, 9)

    bound = 1.0 / math.sqrt(B * Cin)   # matches reset_parameters()
    x = jax.random.normal(k_x, (N, Cin), jnp.float32)
    basis = jax.random.uniform(k_basis, (B, Cin, Cout), jnp.float32, -bound, bound)
    att = jax.random.uniform(k_att, (R, B), jnp.float32, -bound, bound)
    root = jax.random.uniform(k_root, (Cin, Cout), jnp.float32, -bound, bound)
    bias = jax.random.uniform(k_bias, (Cout,), jnp.float32, -bound, bound)

    edge_index = jnp.stack([
        jax.random.randint(k_src, (E,), 0, N),   # source nodes (j)
        jax.random.randint(k_tgt, (E,), 0, N),   # target nodes (i)
    ]).astype(jnp.int32)
    edge_type = jax.random.randint(k_et, (E,), 0, R).astype(jnp.int32)
    edge_norm = jax.random.uniform(k_norm, (E,), jnp.float32, 0.5, 1.5)

    out = rgcn_conv(x, edge_index, edge_type, basis, att, root, bias, edge_norm)
    out = jax.block_until_ready(out)

    ref = rgcn_conv_ref(x, edge_index, edge_type, basis, att, root, bias, edge_norm)
    if not jnp.allclose(out, ref, atol=5e-3, rtol=5e-3):
        err = float(jnp.max(jnp.abs(out - ref)))
        raise AssertionError(
            f"Pallas RGCNConv does not match reference (max abs err {err:.3e})")

    print("KERNEL_OK")
</pallas_src>

<mosaic_0001>
module attributes {stable_mosaic.version = 11 : i64} {
  func.func @_rgcn_kernel(%arg0: i32, %arg1: memref<4xi32, #tpu.memory_space<smem>>, %arg2: memref<8x128xf32, #tpu.memory_space<vmem>>, %arg3: memref<128x1xi32, #tpu.memory_space<vmem>>, %arg4: memref<1x128xi32, #tpu.memory_space<vmem>>, %arg5: memref<1x128xf32, #tpu.memory_space<vmem>>, %arg6: memref<1x128x128xf32, #tpu.memory_space<vmem>>, %arg7: memref<128x128xf32, #tpu.memory_space<vmem>>, %arg8: memref<1x128xf32, #tpu.memory_space<vmem>>, %arg9: memref<8x128xf32, #tpu.memory_space<vmem>>) attributes {dimension_semantics = [#tpu.dimension_semantics<arbitrary>], iteration_bounds = array<i64: 4>, scalar_prefetch = 1 : i64, scratch_operands = 0 : i64, tpu.core_type = #tpu.core_type<tc>, window_params = [{pipeline_mode = #tpu.pipeline_mode<synchronous>, transform_indices = @transform_0, window_bounds = array<i64: 8, 128>}, {transform_indices = @transform_1, window_bounds = array<i64: 128, 1>}, {transform_indices = @transform_2, window_bounds = array<i64: 1, 128>}, {transform_indices = @transform_3, window_bounds = array<i64: 1, 128>}, {transform_indices = @transform_4, window_bounds = array<i64: 1, 128, 128>}, {pipeline_mode = #tpu.pipeline_mode<synchronous>, transform_indices = @transform_5, window_bounds = array<i64: 128, 128>}, {pipeline_mode = #tpu.pipeline_mode<synchronous>, transform_indices = @transform_6, window_bounds = array<i64: 1, 128>}, {pipeline_mode = #tpu.pipeline_mode<synchronous>, transform_indices = @transform_7, window_bounds = array<i64: 8, 128>}]} {
    %c0_i32 = arith.constant 0 : i32
    %0 = arith.cmpi eq, %arg0, %c0_i32 : i32
    %1 = arith.extui %0 : i1 to i32
    %c0_i32_0 = arith.constant 0 : i32
    %2 = arith.cmpi ne, %1, %c0_i32_0 : i32
    scf.if %2 {
      %c0_18 = arith.constant 0 : index
      %c0_19 = arith.constant 0 : index
      %27 = vector.load %arg2[%c0_18, %c0_19] : memref<8x128xf32, #tpu.memory_space<vmem>>, vector<8x128xf32>
      %c0_20 = arith.constant 0 : index
      %c0_21 = arith.constant 0 : index
      %28 = vector.load %arg7[%c0_20, %c0_21] : memref<128x128xf32, #tpu.memory_space<vmem>>, vector<128x128xf32>
      %cst_22 = arith.constant dense<0.000000e+00> : vector<8x128xf32>
      %29 = tpu.matmul %27, %28, %cst_22 {dimension_numbers = #tpu.dot_dimension_numbers<[1], [0], [0], [1], [0, 0, 1, 1], [], []>} : vector<8x128xf32>, vector<128x128xf32>, vector<8x128xf32> -> vector<8x128xf32>
      %c0_23 = arith.constant 0 : index
      %c0_24 = arith.constant 0 : index
      %30 = vector.load %arg8[%c0_23, %c0_24] : memref<1x128xf32, #tpu.memory_space<vmem>>, vector<1x128xf32>
      %31 = vector.broadcast %30 : vector<1x128xf32> to vector<8x128xf32>
      %32 = arith.addf %29, %31 : vector<8x128xf32>
      %c0_25 = arith.constant 0 : index
      %c0_26 = arith.constant 0 : index
      %33 = vector.load %arg9[%c0_25, %c0_26] : memref<8x128xf32, #tpu.memory_space<vmem>>, vector<8x128xf32>
      tpu.vector_store %arg9[%c0_25, %c0_26], %32 {strides = array<i32>} : memref<8x128xf32, #tpu.memory_space<vmem>>, vector<8x128xf32>,
    } else {
    }
    %3 = tpu.iota {dimensions = array<i32: 1>} : vector<128x8xi32>
    %c0 = arith.constant 0 : index
    %c0_1 = arith.constant 0 : index
    %4 = vector.load %arg3[%c0, %c0_1] : memref<128x1xi32, #tpu.memory_space<vmem>>, vector<128x1xi32>
    %5 = vector.broadcast %4 : vector<128x1xi32> to vector<128x8xi32>
    %6 = arith.cmpi eq, %5, %3 : vector<128x8xi32>
    %7 = arith.extui %6 : vector<128x8xi1> to vector<128x8xi32>
    %8 = arith.sitofp %7 : vector<128x8xi32> to vector<128x8xf32>
    %c0_2 = arith.constant 0 : index
    %c0_3 = arith.constant 0 : index
    %9 = vector.load %arg2[%c0_2, %c0_3] : memref<8x128xf32, #tpu.memory_space<vmem>>, vector<8x128xf32>
    %cst = arith.constant dense<0.000000e+00> : vector<128x128xf32>
    %10 = tpu.matmul %8, %9, %cst {dimension_numbers = #tpu.dot_dimension_numbers<[1], [0], [0], [1], [0, 0, 1, 1], [], []>} : vector<128x8xf32>, vector<8x128xf32>, vector<128x128xf32> -> vector<128x128xf32>
    %c0_4 = arith.constant 0 : index
    %c0_5 = arith.constant 0 : index
    %c0_6 = arith.constant 0 : index
    %11 = vector.load %arg6[%c0_4, %c0_5, %c0_6] : memref<1x128x128xf32, #tpu.memory_space<vmem>>, vector<1x128x128xf32>
    %12 = vector.shape_cast %11 : vector<1x128x128xf32> to vector<128x128xf32>
    %cst_7 = arith.constant dense<0.000000e+00> : vector<128x128xf32>
    %13 = tpu.matmul %10, %12, %cst_7 {dimension_numbers = #tpu.dot_dimension_numbers<[1], [0], [0], [1], [0, 0, 1, 1], [], []>} : vector<128x128xf32>, vector<128x128xf32>, vector<128x128xf32> -> vector<128x128xf32>
    %14 = tpu.iota {dimensions = array<i32: 0>} : vector<8x128xi32>
    %c0_8 = arith.constant 0 : index
    %c0_9 = arith.constant 0 : index
    %15 = vector.load %arg4[%c0_8, %c0_9] : memref<1x128xi32, #tpu.memory_space<vmem>>, vector<1x128xi32>
    %16 = vector.broadcast %15 : vector<1x128xi32> to vector<8x128xi32>
    %17 = arith.cmpi eq, %14, %16 : vector<8x128xi32>
    %c0_10 = arith.constant 0 : index
    %c0_11 = arith.constant 0 : index
    %18 = vector.load %arg5[%c0_10, %c0_11] : memref<1x128xf32, #tpu.memory_space<vmem>>, vector<1x128xf32>
    %cst_12 = arith.constant 0.000000e+00 : f32
    %19 = vector.shape_cast %18 : vector<1x128xf32> to vector<1x128xf32>
    %20 = vector.broadcast %19 : vector<1x128xf32> to vector<8x128xf32>
    %21 = vector.broadcast %cst_12 : f32 to vector<8x128xf32>
    %22 = arith.select %17, %20, %21 : vector<8x128xi1>, vector<8x128xf32>
    %c0_13 = arith.constant 0 : index
    %c0_14 = arith.constant 0 : index
    %23 = vector.load %arg9[%c0_13, %c0_14] : memref<8x128xf32, #tpu.memory_space<vmem>>, vector<8x128xf32>
    %cst_15 = arith.constant dense<0.000000e+00> : vector<8x128xf32>
    %24 = tpu.matmul %22, %13, %cst_15 {dimension_numbers = #tpu.dot_dimension_numbers<[1], [0], [0], [1], [0, 0, 1, 1], [], []>} : vector<8x128xf32>, vector<128x128xf32>, vector<8x128xf32> -> vector<8x128xf32>
    %25 = arith.addf %23, %24 : vector<8x128xf32>
    %c0_16 = arith.constant 0 : index
    %c0_17 = arith.constant 0 : index
    %26 = vector.load %arg9[%c0_16, %c0_17] : memref<8x128xf32, #tpu.memory_space<vmem>>, vector<8x128xf32>
    tpu.vector_store %arg9[%c0_16, %c0_17], %25 {strides = array<i32>} : memref<8x128xf32, #tpu.memory_space<vmem>>, vector<8x128xf32>,
    return
  }
  func.func @transform_0(%arg0: i32, %arg1: memref<4xi32, #tpu.memory_space<smem>>) -> (i32, i32) {
    %c0_i32 = arith.constant 0 : i32
    %c0_i32_0 = arith.constant 0 : i32
    %c0_i32_1 = arith.constant 0 : i32
    return %c0_i32, %c0_i32_0 : i32, i32
  }
  func.func @transform_1(%arg0: i32, %arg1: memref<4xi32, #tpu.memory_space<smem>>) -> (i32, i32) {
    %c0_i32 = arith.constant 0 : i32
    %c0_i32_0 = arith.constant 0 : i32
    return %arg0, %c0_i32 : i32, i32
  }
  func.func @transform_2(%arg0: i32, %arg1: memref<4xi32, #tpu.memory_space<smem>>) -> (i32, i32) {
    %c0_i32 = arith.constant 0 : i32
    %c0_i32_0 = arith.constant 0 : i32
    return %c0_i32, %arg0 : i32, i32
  }
  func.func @transform_3(%arg0: i32, %arg1: memref<4xi32, #tpu.memory_space<smem>>) -> (i32, i32) {
    %c0_i32 = arith.constant 0 : i32
    %c0_i32_0 = arith.constant 0 : i32
    return %c0_i32, %arg0 : i32, i32
  }
  func.func @transform_4(%arg0: i32, %arg1: memref<4xi32, #tpu.memory_space<smem>>) -> (i32, i32, i32) {
    %0 = arith.index_cast %arg0 : i32 to index
    %1 = memref.load %arg1[%0] : memref<4xi32, #tpu.memory_space<smem>>
    %c0_i32 = arith.constant 0 : i32
    %c0_i32_0 = arith.constant 0 : i32
    %c0_i32_1 = arith.constant 0 : i32
    return %1, %c0_i32, %c0_i32_0 : i32, i32, i32
  }
  func.func @transform_5(%arg0: i32, %arg1: memref<4xi32, #tpu.memory_space<smem>>) -> (i32, i32) {
    %c0_i32 = arith.constant 0 : i32
    %c0_i32_0 = arith.constant 0 : i32
    %c0_i32_1 = arith.constant 0 : i32
    return %c0_i32, %c0_i32_0 : i32, i32
  }
  func.func @transform_6(%arg0: i32, %arg1: memref<4xi32, #tpu.memory_space<smem>>) -> (i32, i32) {
    %c0_i32 = arith.constant 0 : i32
    %c0_i32_0 = arith.constant 0 : i32
    %c0_i32_1 = arith.constant 0 : i32
    return %c0_i32, %c0_i32_0 : i32, i32
  }
  func.func @transform_7(%arg0: i32, %arg1: memref<4xi32, #tpu.memory_space<smem>>) -> (i32, i32) {
    %c0_i32 = arith.constant 0 : i32
    %c0_i32_0 = arith.constant 0 : i32
    %c0_i32_1 = arith.constant 0 : i32
    return %c0_i32, %c0_i32_0 : i32, i32
  }
}

</mosaic_0001>

<llo_original>
// kernel: tpu_custom_call.1
$region0: #{tpu_custom_call.1}
  #allocation0 [shape = 'u32[]', space=smem, size = 0x4, offset = 0x4, fixed_abs, tag = 'smem constant byte address 0x4 - core index']
  #allocation1 [shape = 'u32[144,128]{1,0:T(1,128)}', space=vmem, size = 0x12000, scoped, tag = 'internal scratch']
  #allocation2 [shape = 's32[1]{0}', space=sflag, size = 0x4, scoped, tag = 'scoped memory for tpu_custom_call.1']
  #allocation3 [shape = 'u8[512]{0}', space=smem, size = 0x200, scoped, tag = 'prefetched SMEM operand 0']
  %s0 = inlined_call_operand.vmem [shape: s32[4], index: 0, kind: input, shape index: {}]
  %s1 = inlined_call_operand.vmem [shape: f32[8,128], index: 1, kind: input, shape index: {}]
  %s2 = inlined_call_operand.vmem [shape: s32[512,1], index: 2, kind: input, shape index: {}]
  %s3 = inlined_call_operand.vmem [shape: s32[1,512], index: 3, kind: input, shape index: {}]
  %s4 = inlined_call_operand.hbm [shape: f32[1,512], index: 4, kind: input, shape index: {}]
  %s5 = inlined_call_operand.vmem [shape: f32[4,128,128], index: 5, kind: input, shape index: {}]
  %s6 = inlined_call_operand.hbm [shape: f32[128,128], index: 6, kind: input, shape index: {}]
  %s7 = inlined_call_operand.vmem [shape: f32[1,128], index: 7, kind: input, shape index: {}]
  %s8 = inlined_call_operand.hbm [shape: f32[8,128], index: 8, kind: output, shape index: {}]
  %s9 = sld [smem:[#allocation0]]
  $region73: #{tpu_custom_call.1} parent=0
    _
  %s11 = ssub.s32 1, %s9
  %s12 = scalar_select 0, %s11, %s9
  %s13 = sshll.u32 %s0, 4
  %s14 = int_to_ptr.vmem [resolvable:$true] %s13
  %16 = dma.vmem_to_smem %s14, 16, [#allocation3], [#allocation2]
  %17 = dma.done [#allocation2], 16
  %18 = sfence
  $region1: #{tpu_custom_call.1} parent=0
    #allocation4 [shape = 'u8[1024]{0}', space=vmem, size = 0x400, scoped, tag = 'input window, operand 4']
    #allocation5 [shape = 's32[2]{0}', space=sflag, size = 0x8, scoped, tag = 'scoped memory for tpu_custom_call.1']
    #allocation6 [shape = 's32[2]{0}', space=sflag, size = 0x8, scoped, tag = 'scoped memory for tpu_custom_call.1']
    #allocation7 [shape = 'u8[65536]{0}', space=vmem, size = 0x10000, scoped, tag = 'input window, operand 6, single buffered']
    #allocation8 [shape = 's32[1]{0}', space=sflag, size = 0x4, scoped, tag = 'scoped memory for tpu_custom_call.1']
    #allocation9 [shape = 'u8[4096]{0}', space=vmem, size = 0x1000, scoped, tag = 'output window, operand 0, single buffered']
    %19 = vsyncpa [#allocation5], 0
    %s20 = scalar_lea.sflag [#allocation5], 1
    %21 = vsyncpa %s20, 0
    %22 = vsyncpa [#allocation8], 0
    %23 = vsyncpa [#allocation6], 0
    loop: start=0, step=1, limit=6
    $region2: #{tpu_custom_call.1} parent=1 // loop_pre_header
      _
    $region3: #{tpu_custom_call.1} parent=1 // loop_header
      %s25 = sphi 0, %s29
      %p26 = scmp.ge.s32.totalorder %s25, 6
      %s33 = sphi 0, %s33
      %s35 = sphi 0, %s33
      %s36 = sphi 0, %s35
      %s50 = sphi 0, %s36
      %s56 = sphi 0, %s58
      %s59 = sphi 0, %s56
      %s60 = sphi 0, %s59
      %s76 = sphi 0, %s60
      %s82 = sphi 0, %s84
      %s85 = sphi 0, %s82
      %s86 = sphi 0, %s85
      %s102 = sphi 0, %s86
      %s108 = sphi 0, %s110
      %s111 = sphi 0, %s108
      %s112 = sphi 0, %s111
      %s128 = sphi 0, %s112
      %s136 = sphi 0, %s138
      %s139 = sphi 0, %s136
      %s140 = sphi 0, %s139
      %s156 = sphi 0, %s140
      %s160 = sphi 0, %s160
      %s162 = sphi 0, %s160
      %s163 = sphi 0, %s162
      %s177 = sphi 0, %s163
      %s181 = sphi 0, %s181
      %s183 = sphi 0, %s181
      %s184 = sphi 0, %s183
      %s198 = sphi 0, %s184
      %s202 = sphi 0, %s202
      %s204 = sphi 0, %s202
      %s205 = sphi 0, %s204
      %s219 = sphi 0, %s205
    $region4: #{tpu_custom_call.1} parent=1 // loop_header_branch
      %28 = sbr.rel (%p26) target = $region8
    $region5: #{tpu_custom_call.1} parent=1 // loop_body
      %s30 = ssub.s32 %s25, 1
      %s31 = ssub.s32 %s25, 2
      %s32 = sadd.s32 %s25, 1
      %s34 = sadd.s32 %s33, 1
      %p37 = scmp.eq.s32.totalorder %s25, 3
      %p38 = scmp.ne.s32.totalorder %s33, %s35
      %p39 = scmp.eq.s32.totalorder %s25, 0
      %p40 = por %p38, %p39
      %p41 = scmp.ne.s32.totalorder %s33, %s35
      %p42 = scmp.eq.s32.totalorder %s30, 3
      %p43 = por %p41, %p42
      %p44 = scmp.ne.s32.totalorder %s35, %s36
      %p45 = scmp.eq.s32.totalorder %s30, 0
      %p46 = por %p44, %p45
      %p47 = scmp.ne.s32.totalorder %s35, %s36
      %p48 = scmp.eq.s32.totalorder %s31, 3
      %p49 = por %p47, %p48
      %p51 = scmp.ne.s32.totalorder %s36, %s50
      %p52 = scmp.eq.s32.totalorder %s31, 0
      %p53 = por %p51, %p52
      %s54 = ssub.s32 %s25, %s32
      %p55 = scmp.eq.s32.totalorder %s54, 0
      %s57 = sadd.s32 %s56, 1
      %s58 = scalar_select %p55, %s56, %s57
      %p61 = pneg %p55
      %p62 = scmp.eq.s32.totalorder %s25, 3
      %p63 = por %p61, %p62
      %p64 = scmp.ne.s32.totalorder %s56, %s59
      %p65 = scmp.eq.s32.totalorder %s25, 0
      %p66 = por %p64, %p65
      %p67 = scmp.ne.s32.totalorder %s56, %s59
      %p68 = scmp.eq.s32.totalorder %s30, 3
      %p69 = por %p67, %p68
      %p70 = scmp.ne.s32.totalorder %s59, %s60
      %p71 = scmp.eq.s32.totalorder %s30, 0
      %p72 = por %p70, %p71
      %p73 = scmp.ne.s32.totalorder %s59, %s60
      %p74 = scmp.eq.s32.totalorder %s31, 3
      %p75 = por %p73, %p74
      %p77 = scmp.ne.s32.totalorder %s60, %s76
      %p78 = scmp.eq.s32.totalorder %s31, 0
      %p79 = por %p77, %p78
      %s80 = ssub.s32 %s25, %s32
      %p81 = scmp.eq.s32.totalorder %s80, 0
      %s83 = sadd.s32 %s82, 1
      %s84 = scalar_select %p81, %s82, %s83
      %p87 = pneg %p81
      %p88 = scmp.eq.s32.totalorder %s25, 3
      %p89 = por %p87, %p88
      %p90 = scmp.ne.s32.totalorder %s82, %s85
      %p91 = scmp.eq.s32.totalorder %s25, 0
      %p92 = por %p90, %p91
      %p93 = scmp.ne.s32.totalorder %s82, %s85
      %p94 = scmp.eq.s32.totalorder %s30, 3
      %p95 = por %p93, %p94
      %p96 = scmp.ne.s32.totalorder %s85, %s86
      %p97 = scmp.eq.s32.totalorder %s30, 0
      %p98 = por %p96, %p97
      %p99 = scmp.ne.s32.totalorder %s85, %s86
      %p100 = scmp.eq.s32.totalorder %s31, 3
      %p101 = por %p99, %p100
      %p103 = scmp.ne.s32.totalorder %s86, %s102
      %p104 = scmp.eq.s32.totalorder %s31, 0
      %p105 = por %p103, %p104
      %s106 = ssub.s32 %s25, %s32
      %p107 = scmp.eq.s32.totalorder %s106, 0
      %s109 = sadd.s32 %s108, 1
      %s110 = scalar_select %p107, %s108, %s109
      %p113 = pneg %p107
      %p114 = scmp.eq.s32.totalorder %s25, 3
      %p115 = por %p113, %p114
      %p116 = scmp.ne.s32.totalorder %s108, %s111
      %p117 = scmp.eq.s32.totalorder %s25, 0
      %p118 = por %p116, %p117
      %p119 = scmp.ne.s32.totalorder %s108, %s111
      %p120 = scmp.eq.s32.totalorder %s30, 3
      %p121 = por %p119, %p120
      %p122 = scmp.ne.s32.totalorder %s111, %s112
      %p123 = scmp.eq.s32.totalorder %s30, 0
      %p124 = por %p122, %p123
      %p125 = scmp.ne.s32.totalorder %s111, %s112
      %p126 = scmp.eq.s32.totalorder %s31, 3
      %p127 = por %p125, %p126
      %p129 = scmp.ne.s32.totalorder %s112, %s128
      %p130 = scmp.eq.s32.totalorder %s31, 0
      %p131 = por %p129, %p130
      %s132 = sld [smem:[#allocation3 + %s25]]
      %s133 = sld [smem:[#allocation3 + %s32]]
      %s134 = ssub.s32 %s132, %s133
      %p135 = scmp.eq.s32.totalorder %s134, 0
      %s137 = sadd.s32 %s136, 1
      %s138 = scalar_select %p135, %s136, %s137
      %p141 = pneg %p135
      %p142 = scmp.eq.s32.totalorder %s25, 3
      %p143 = por %p141, %p142
      %p144 = scmp.ne.s32.totalorder %s136, %s139
      %p145 = scmp.eq.s32.totalorder %s25, 0
      %p146 = por %p144, %p145
      %p147 = scmp.ne.s32.totalorder %s136, %s139
      %p148 = scmp.eq.s32.totalorder %s30, 3
      %p149 = por %p147, %p148
      %p150 = scmp.ne.s32.totalorder %s139, %s140
      %p151 = scmp.eq.s32.totalorder %s30, 0
      %p152 = por %p150, %p151
      %p153 = scmp.ne.s32.totalorder %s139, %s140
      %p154 = scmp.eq.s32.totalorder %s31, 3
      %p155 = por %p153, %p154
      %p157 = scmp.ne.s32.totalorder %s140, %s156
      %p158 = scmp.eq.s32.totalorder %s31, 0
      %p159 = por %p157, %p158
      %s161 = sadd.s32 %s160, 1
      %p164 = scmp.eq.s32.totalorder %s25, 3
      %p165 = scmp.ne.s32.totalorder %s160, %s162
      %p166 = scmp.eq.s32.totalorder %s25, 0
      %p167 = por %p165, %p166
      %p168 = scmp.ne.s32.totalorder %s160, %s162
      %p169 = scmp.eq.s32.totalorder %s30, 3
      %p170 = por %p168, %p169
      %p171 = scmp.ne.s32.totalorder %s162, %s163
      %p172 = scmp.eq.s32.totalorder %s30, 0
      %p173 = por %p171, %p172
      %p174 = scmp.ne.s32.totalorder %s162, %s163
      %p175 = scmp.eq.s32.totalorder %s31, 3
      %p176 = por %p174, %p175
      %p178 = scmp.ne.s32.totalorder %s163, %s177
      %p179 = scmp.eq.s32.totalorder %s31, 0
      %p180 = por %p178, %p179
      %s182 = sadd.s32 %s181, 1
      %p185 = scmp.eq.s32.totalorder %s25, 3
      %p186 = scmp.ne.s32.totalorder %s181, %s183
      %p187 = scmp.eq.s32.totalorder %s25, 0
      %p188 = por %p186, %p187
      %p189 = scmp.ne.s32.totalorder %s181, %s183
      %p190 = scmp.eq.s32.totalorder %s30, 3
      %p191 = por %p189, %p190
      %p192 = scmp.ne.s32.totalorder %s183, %s184
      %p193 = scmp.eq.s32.totalorder %s30, 0
      %p194 = por %p192, %p193
      %p195 = scmp.ne.s32.totalorder %s183, %s184
      %p196 = scmp.eq.s32.totalorder %s31, 3
      %p197 = por %p195, %p196
      %p199 = scmp.ne.s32.totalorder %s184, %s198
      %p200 = scmp.eq.s32.totalorder %s31, 0
      %p201 = por %p199, %p200
      %s203 = sadd.s32 %s202, 1
      %p206 = scmp.eq.s32.totalorder %s25, 3
      %p207 = scmp.ne.s32.totalorder %s202, %s204
      %p208 = scmp.eq.s32.totalorder %s25, 0
      %p209 = por %p207, %p208
      %p210 = scmp.ne.s32.totalorder %s202, %s204
      %p211 = scmp.eq.s32.totalorder %s30, 3
      %p212 = por %p210, %p211
      %p213 = scmp.ne.s32.totalorder %s204, %s205
      %p214 = scmp.eq.s32.totalorder %s30, 0
      %p215 = por %p213, %p214
      %p216 = scmp.ne.s32.totalorder %s204, %s205
      %p217 = scmp.eq.s32.totalorder %s31, 3
      %p218 = por %p216, %p217
      %p220 = scmp.ne.s32.totalorder %s205, %s219
      %p221 = scmp.eq.s32.totalorder %s31, 0
      %p222 = por %p220, %p221
      %p223 = scmp.le.s32.totalorder 1, %s25
      %p224 = scmp.lt.s32.totalorder %s25, 5
      %p225 = pnand %p223, %p224
      %p226 = pneg %p225
      // Predicated region
      $region9: #{tpu_custom_call.1} parent=5 // pred_check
        _
      $region10: #{tpu_custom_call.1} parent=5 // pred_check_branch
        %228 = sbr.rel (%p225) target = $region12
      $region11: #{tpu_custom_call.1} parent=5 // pred_region
        %s229 = ssub.s32 %s25, 1
        // Predicated region
        $region13: #{tpu_custom_call.1} parent=11 // pred_check
          %p230 = pneg %p46
        $region14: #{tpu_custom_call.1} parent=11 // pred_check_branch
          %232 = sbr.rel (%p230) target = $region16
        $region15: #{tpu_custom_call.1} parent=11 // pred_region
          _
        $region16: #{tpu_custom_call.1} parent=11 // pred_fallthru
          _
        // Predicated region
        $region17: #{tpu_custom_call.1} parent=11 // pred_check
          %p233 = pneg %p173
        $region18: #{tpu_custom_call.1} parent=11 // pred_check_branch
          %235 = sbr.rel (%p233) target = $region20
        $region19: #{tpu_custom_call.1} parent=11 // pred_region
          %s237 = ssub.s32 2048, 2048
          %238 = vsyncadd [#allocation8], %s237
          %s239 = sshll.u32 [#allocation7], 4
          %s240 = int_to_ptr.vmem [resolvable:$true] %s239
          %245 = dma.hbm_to_vmem [thread:$0]  %s6, 2048, %s240, [#allocation8], 128, 128, 8
        $region20: #{tpu_custom_call.1} parent=11 // pred_fallthru
          _
        // Predicated region
        $region21: #{tpu_custom_call.1} parent=11 // pred_check
          %p246 = pneg %p194
        $region22: #{tpu_custom_call.1} parent=11 // pred_check_branch
          %248 = sbr.rel (%p246) target = $region24
        $region23: #{tpu_custom_call.1} parent=11 // pred_region
          _
        $region24: #{tpu_custom_call.1} parent=11 // pred_fallthru
          _
      $region12: #{tpu_custom_call.1} parent=5 // pred_fallthru
        _
      %p249 = scmp.lt.s32.totalorder %s25, 4
      // Predicated region
      $region25: #{tpu_custom_call.1} parent=5 // pred_check
        %p250 = pneg %p249
      $region26: #{tpu_custom_call.1} parent=5 // pred_check_branch
        %252 = sbr.rel (%p250) target = $region28
      $region27: #{tpu_custom_call.1} parent=5 // pred_region
        // Predicated region
        $region29: #{tpu_custom_call.1} parent=27 // pred_check
          %p253 = pneg %p66
        $region30: #{tpu_custom_call.1} parent=27 // pred_check_branch
          %255 = sbr.rel (%p253) target = $region32
        $region31: #{tpu_custom_call.1} parent=27 // pred_region
          %s256 = smul.u32 16, %s25
          %p257 = scmp.lt.s32.totalorder %s256, 63
          %s258 = scalar_select %p257, %s256, 63
          %s259 = smul.addr %s258, 8
          %s260 = scalar_lea.vmem %s2, %s259
          %s261 = smul.u32 16, %s25
        $region32: #{tpu_custom_call.1} parent=27 // pred_fallthru
          _
        // Predicated region
        $region33: #{tpu_custom_call.1} parent=27 // pred_check
          %p262 = pneg %p92
        $region34: #{tpu_custom_call.1} parent=27 // pred_check_branch
          %264 = sbr.rel (%p262) target = $region36
        $region35: #{tpu_custom_call.1} parent=27 // pred_region
          %p265 = scmp.lt.s32.totalorder %s25, 3
          %s266 = scalar_select %p265, %s25, 3
          %s267 = scalar_lea.vmem %s3, %s266
        $region36: #{tpu_custom_call.1} parent=27 // pred_fallthru
          _
        // Predicated region
        $region37: #{tpu_custom_call.1} parent=27 // pred_check
          %p268 = pneg %p118
        $region38: #{tpu_custom_call.1} parent=27 // pred_check_branch
          %270 = sbr.rel (%p268) target = $region40
        $region39: #{tpu_custom_call.1} parent=27 // pred_region
          %s271 = sand.u32 %s108, 1
          %s272 = scalar_lea.sflag [#allocation5], %s271
          %s273 = sand.u32 %s108, 1
          %s274 = scalar_lea.vmem [#allocation4], %s273
          %s276 = ssub.s32 16, 16
          %277 = vsyncadd %s272, %s276
          %s278 = smul.addr %s25, 16
          %s279 = scalar_lea.hbm %s4, %s278
          %s281 = sshll.u32 %s274, 4
          %s282 = int_to_ptr.vmem [resolvable:$true] %s281
          %284 = dma.hbm_to_vmem [thread:$0]  %s279, 16, %s282, %s272
        $region40: #{tpu_custom_call.1} parent=27 // pred_fallthru
          _
        // Predicated region
        $region41: #{tpu_custom_call.1} parent=27 // pred_check
          %p285 = pneg %p146
        $region42: #{tpu_custom_call.1} parent=27 // pred_check_branch
          %287 = sbr.rel (%p285) target = $region44
        $region43: #{tpu_custom_call.1} parent=27 // pred_region
          %s288 = sld [smem:[#allocation3 + %s25]]
          %p289 = scmp.lt.s32.totalorder %s288, 3
          %s290 = scalar_select %p289, %s288, 3
          %s291 = smul.addr %s290, 16
          %s292 = smul.addr %s291, 8
          %s293 = scalar_lea.vmem %s5, %s292
          %s294 = sld [smem:[#allocation3 + %s25]]
        $region44: #{tpu_custom_call.1} parent=27 // pred_fallthru
          _
      $region28: #{tpu_custom_call.1} parent=5 // pred_fallthru
        _
      %p295 = scmp.le.s32.totalorder 1, %s25
      %p296 = scmp.lt.s32.totalorder %s25, 5
      %p297 = pnand %p295, %p296
      %p298 = pneg %p297
      // Predicated region
      $region45: #{tpu_custom_call.1} parent=5 // pred_check
        _
      $region46: #{tpu_custom_call.1} parent=5 // pred_check_branch
        %300 = sbr.rel (%p297) target = $region48
      $region47: #{tpu_custom_call.1} parent=5 // pred_region
        %s301 = ssub.s32 %s25, 1
        %s302 = sand.u32 %s111, 1
        %s303 = scalar_lea.sflag [#allocation5], %s302
        %s304 = sand.u32 %s111, 1
        %s305 = scalar_lea.vmem [#allocation4], %s304
        // Predicated region
        $region49: #{tpu_custom_call.1} parent=47 // pred_check
          %p306 = pneg %p124
        $region50: #{tpu_custom_call.1} parent=47 // pred_check_branch
          %308 = sbr.rel (%p306) target = $region52
        $region51: #{tpu_custom_call.1} parent=47 // pred_region
          %309 = dma.done %s303, 16
        $region52: #{tpu_custom_call.1} parent=47 // pred_fallthru
          _
        // Predicated region
        $region53: #{tpu_custom_call.1} parent=47 // pred_check
          %p310 = pneg %p173
        $region54: #{tpu_custom_call.1} parent=47 // pred_check_branch
          %312 = sbr.rel (%p310) target = $region56
        $region55: #{tpu_custom_call.1} parent=47 // pred_region
          %313 = dma.done [#allocation8], 2048
        $region56: #{tpu_custom_call.1} parent=47 // pred_fallthru
          _
        %p314 = pneg %p46
        %p315 = pneg %p43
        %s316 = smul.u32 16, %s30
        %p317 = scmp.lt.s32.totalorder %s316, 63
        %s318 = scalar_select %p317, %s316, 63
        %s319 = smul.addr %s318, 8
        %s320 = scalar_lea.vmem %s2, %s319
        %p321 = pneg %p72
        %p322 = pneg %p69
        %p323 = scmp.lt.s32.totalorder %s30, 3
        %s324 = scalar_select %p323, %s30, 3
        %s325 = scalar_lea.vmem %s3, %s324
        %p326 = pneg %p98
        %p327 = pneg %p95
        %s328 = sand.u32 %s111, 1
        %s329 = scalar_lea.sflag [#allocation5], %s328
        %s330 = sand.u32 %s111, 1
        %s331 = scalar_lea.vmem [#allocation4], %s330
        %p332 = pneg %p124
        %p333 = pneg %p121
        %s334 = sld [smem:[#allocation3 + %s30]]
        %p335 = scmp.lt.s32.totalorder %s334, 3
        %s336 = scalar_select %p335, %s334, 3
        %s337 = smul.addr %s336, 16
        %s338 = smul.addr %s337, 8
        %s339 = scalar_lea.vmem %s5, %s338
        %p340 = pneg %p152
        %p341 = pneg %p149
        %p342 = pneg %p173
        %p343 = pneg %p170
        %p344 = pneg %p194
        %p345 = pneg %p191
        %p346 = pneg %p215
        %p347 = pneg %p212
        %s348 = smul.u32 16, %s30
        %p349 = scmp.lt.s32.totalorder %s348, 63
        %s350 = scalar_select %p349, %s348, 63
        %s351 = smul.addr %s350, 8
        %s352 = scalar_lea.vmem %s2, %s351
        %s353 = smul.u32 16, %s30
        %p354 = scmp.lt.s32.totalorder %s30, 3
        %s355 = scalar_select %p354, %s30, 3
        %s356 = scalar_lea.vmem %s3, %s355
        %s357 = sld [smem:[#allocation3 + %s30]]
        %p358 = scmp.lt.s32.totalorder %s357, 3
        %s359 = scalar_select %p358, %s357, 3
        %s360 = smul.addr %s359, 16
        %s361 = smul.addr %s360, 8
        %s362 = scalar_lea.vmem %s5, %s361
        %s363 = sld [smem:[#allocation3 + %s30]]
        %p364 = scmp.eq.s32.totalorder %s30, 0
        // Predicated region
        $region57: #{tpu_custom_call.1} parent=47 // pred_check
          %p365 = pneg %p364
        $region58: #{tpu_custom_call.1} parent=47 // pred_check_branch
          %367 = sbr.rel (%p365) target = $region60
        $region59: #{tpu_custom_call.1} parent=47 // pred_region
          %v368 = vld [vmem:[%s1] sm:$0xff]
          %v369 = vld [vmem:[#allocation7] sm:$0xff]
          %v370 = vld [vmem:[#allocation7 + $0x8] sm:$0xff]
          %v371 = vld [vmem:[#allocation7 + $0x10] sm:$0xff]
          %v372 = vld [vmem:[#allocation7 + $0x18] sm:$0xff]
          %v373 = vld [vmem:[#allocation7 + $0x20] sm:$0xff]
          %v374 = vld [vmem:[#allocation7 + $0x28] sm:$0xff]
          %v375 = vld [vmem:[#allocation7 + $0x30] sm:$0xff]
          %v376 = vld [vmem:[#allocation7 + $0x38] sm:$0xff]
          %v377 = vld [vmem:[#allocation7 + $0x40] sm:$0xff]
          %v378 = vld [vmem:[#allocation7 + $0x48] sm:$0xff]
          %v379 = vld [vmem:[#allocation7 + $0x50] sm:$0xff]
          %v380 = vld [vmem:[#allocation7 + $0x58] sm:$0xff]
          %v381 = vld [vmem:[#allocation7 + $0x60] sm:$0xff]
          %v382 = vld [vmem:[#allocation7 + $0x68] sm:$0xff]
          %v383 = vld [vmem:[#allocation7 + $0x70] sm:$0xff]
          %v384 = vld [vmem:[#allocation7 + $0x78] sm:$0xff]
          %v385 = vld [vmem:[%s7] sm:$0x1]
          %v387 = vlaneseq
          %v388 = vshrl.u32 %v387, 7
          %v389 = vsub.s32 0, %v388
          %v390 = vrot.slane %v385, %v389
          %392 = vmatprep.subr.mxu0 0.0
          %393 = vmatpush1.msra.mxu0 %v384
          %394 = vmatprep.subr.mxu0 0.0
          %395 = vmatpush1.msra.mxu0 %v383
          %396 = vmatprep.subr.mxu0 0.0
          %397 = vmatpush1.msra.mxu0 %v382
          %398 = vmatprep.subr.mxu0 0.0
          %399 = vmatpush1.msra.mxu0 %v381
          %400 = vmatprep.subr.mxu0 0.0
          %401 = vmatpush1.msra.mxu0 %v380
          %402 = vmatprep.subr.mxu0 0.0
          %403 = vmatpush1.msra.mxu0 %v379
          %404 = vmatprep.subr.mxu0 0.0
          %405 = vmatpush1.msra.mxu0 %v378
          %406 = vmatprep.subr.mxu0 0.0
          %407 = vmatpush1.msra.mxu0 %v377
          %408 = vmatprep.subr.mxu0 0.0
          %409 = vmatpush1.msra.mxu0 %v376
          %410 = vmatprep.subr.mxu0 0.0
          %411 = vmatpush1.msra.mxu0 %v375
          %412 = vmatprep.subr.mxu0 0.0
          %413 = vmatpush1.msra.mxu0 %v374
          %414 = vmatprep.subr.mxu0 0.0
          %415 = vmatpush1.msra.mxu0 %v373
          %416 = vmatprep.subr.mxu0 0.0
          %417 = vmatpush1.msra.mxu0 %v372
          %418 = vmatprep.subr.mxu0 0.0
          %419 = vmatpush1.msra.mxu0 %v371
          %420 = vmatprep.subr.mxu0 0.0
          %421 = vmatpush1.msra.mxu0 %v370
          %422 = vmatprep.subr.mxu0 0.0
          %423 = vmatpush1.msra.mxu0 %v369
          %424 = vmatprep.subr.mxu0 0.0
          %425 = vmatpush2.msra.mxu0 0.0
          %426 = vmatprep.subr.mxu0 0.0
          %427 = vmatpush2.msra.mxu0 0.0
          %428 = vmatprep.subr.mxu0 0.0
          %429 = vmatpush2.msra.mxu0 0.0
          %430 = vmatprep.subr.mxu0 0.0
          %431 = vmatpush2.msra.mxu0 0.0
          %432 = vmatprep.subr.mxu0 0.0
          %433 = vmatpush2.msra.mxu0 0.0
          %434 = vmatprep.subr.mxu0 0.0
          %435 = vmatpush2.msra.mxu0 0.0
          %436 = vmatprep.subr.mxu0 0.0
          %437 = vmatpush2.msra.mxu0 0.0
          %438 = vmatprep.subr.mxu0 0.0
          %439 = vmatpush2.msra.mxu0 0.0
          %440 = vmatprep.subr.mxu0 0.0
          %441 = vmatpush2.msra.mxu0 0.0
          %442 = vmatprep.subr.mxu0 0.0
          %443 = vmatpush2.msra.mxu0 0.0
          %444 = vmatprep.subr.mxu0 0.0
          %445 = vmatpush2.msra.mxu0 0.0
          %446 = vmatprep.subr.mxu0 0.0
          %447 = vmatpush2.msra.mxu0 0.0
          %448 = vmatprep.subr.mxu0 0.0
          %449 = vmatpush2.msra.mxu0 0.0
          %450 = vmatprep.subr.mxu0 0.0
          %451 = vmatpush2.msra.mxu0 0.0
          %452 = vmatprep.subr.mxu0 0.0
          %453 = vmatpush2.msra.mxu0 0.0
          %454 = vmatprep.subr.mxu0 0.0
          %455 = vmatpush2.msra.mxu0 0.0
          %456 = vmatprep.mubr.f32.mxu0 0.0
          %457 = vmatmul.mubr.f32.gmra.mxu0 %v368
          %v458 = vpop.f32.mrf.mxu0
          %v459 = vadd.f32 %v390, %v458
          %v460 = vpop.f32.mrf.mxu0
          %461 = vdwg.mxu0
          %462 = vst [vmem:[#allocation9] sm:$0xff] %v459
        $region60: #{tpu_custom_call.1} parent=47 // pred_fallthru
          _
        %v463 = vlaneseq
        %v464 = vand.u32 %v463, 127
        %v465 = vld [vmem:[%s352] sm:$0xff]
        %v466 = vld [vmem:[%s352 + $0x8] sm:$0xff]
        %v467 = vld [vmem:[%s352 + $0x10] sm:$0xff]
        %v468 = vld [vmem:[%s352 + $0x18] sm:$0xff]
        %v469 = vld [vmem:[%s352 + $0x20] sm:$0xff]
        %v470 = vld [vmem:[%s352 + $0x28] sm:$0xff]
        %v471 = vld [vmem:[%s352 + $0x30] sm:$0xff]
        %v472 = vld [vmem:[%s352 + $0x38] sm:$0xff]
        %v473 = vld [vmem:[%s352 + $0x40] sm:$0xff]
        %v474 = vld [vmem:[%s352 + $0x48] sm:$0xff]
        %v475 = vld [vmem:[%s352 + $0x50] sm:$0xff]
        %v476 = vld [vmem:[%s352 + $0x58] sm:$0xff]
        %v477 = vld [vmem:[%s352 + $0x60] sm:$0xff]
        %v478 = vld [vmem:[%s352 + $0x68] sm:$0xff]
        %v479 = vld [vmem:[%s352 + $0x70] sm:$0xff]
        %v480 = vld [vmem:[%s352 + $0x78] sm:$0xff]
        %481 = vset.pattern.permute.xlu0 0
        %482 = vperm.xlu0 %481, %v465
        %v483 = vpop.permute.xlu0 %482
        %484 = vset.pattern.permute.xlu0 0
        %485 = vperm.xlu0 %484, %v466
        %v486 = vpop.permute.xlu0 %485
        %487 = vset.pattern.permute.xlu0 0
        %488 = vperm.xlu0 %487, %v467
        %v489 = vpop.permute.xlu0 %488
        %490 = vset.pattern.permute.xlu0 0
        %491 = vperm.xlu0 %490, %v468
        %v492 = vpop.permute.xlu0 %491
        %493 = vset.pattern.permute.xlu0 0
        %494 = vperm.xlu0 %493, %v469
        %v495 = vpop.permute.xlu0 %494
        %496 = vset.pattern.permute.xlu0 0
        %497 = vperm.xlu0 %496, %v470
        %v498 = vpop.permute.xlu0 %497
        %499 = vset.pattern.permute.xlu0 0
        %500 = vperm.xlu0 %499, %v471
        %v501 = vpop.permute.xlu0 %500
        %502 = vset.pattern.permute.xlu0 0
        %503 = vperm.xlu0 %502, %v472
        %v504 = vpop.permute.xlu0 %503
        %505 = vset.pattern.permute.xlu0 0
        %506 = vperm.xlu0 %505, %v473
        %v507 = vpop.permute.xlu0 %506
        %508 = vset.pattern.permute.xlu0 0
        %509 = vperm.xlu0 %508, %v474
        %v510 = vpop.permute.xlu0 %509
        %511 = vset.pattern.permute.xlu0 0
        %512 = vperm.xlu0 %511, %v475
        %v513 = vpop.permute.xlu0 %512
        %514 = vset.pattern.permute.xlu0 0
        %515 = vperm.xlu0 %514, %v476
        %v516 = vpop.permute.xlu0 %515
        %517 = vset.pattern.permute.xlu0 0
        %518 = vperm.xlu0 %517, %v477
        %v519 = vpop.permute.xlu0 %518
        %520 = vset.pattern.permute.xlu0 0
        %521 = vperm.xlu0 %520, %v478
        %v522 = vpop.permute.xlu0 %521
        %523 = vset.pattern.permute.xlu0 0
        %524 = vperm.xlu0 %523, %v479
        %v525 = vpop.permute.xlu0 %524
        %526 = vset.pattern.permute.xlu0 0
        %527 = vperm.xlu0 %526, %v480
        %v528 = vpop.permute.xlu0 %527
        %vm529 = vcmp.eq.s32.totalorder %v483, %v464
        %vm530 = vcmp.eq.s32.totalorder %v486, %v464
        %vm531 = vcmp.eq.s32.totalorder %v489, %v464
        %vm532 = vcmp.eq.s32.totalorder %v492, %v464
        %vm533 = vcmp.eq.s32.totalorder %v495, %v464
        %vm534 = vcmp.eq.s32.totalorder %v498, %v464
        %vm535 = vcmp.eq.s32.totalorder %v501, %v464
        %vm536 = vcmp.eq.s32.totalorder %v504, %v464
        %vm537 = vcmp.eq.s32.totalorder %v507, %v464
        %vm538 = vcmp.eq.s32.totalorder %v510, %v464
        %vm539 = vcmp.eq.s32.totalorder %v513, %v464
        %vm540 = vcmp.eq.s32.totalorder %v516, %v464
        %vm541 = vcmp.eq.s32.totalorder %v519, %v464
        %vm542 = vcmp.eq.s32.totalorder %v522, %v464
        %vm543 = vcmp.eq.s32.totalorder %v525, %v464
        %vm544 = vcmp.eq.s32.totalorder %v528, %v464
        %v545 = vsel %vm529, 1, 0
        %v546 = vsel %vm530, 1, 0
        %v547 = vsel %vm531, 1, 0
        %v548 = vsel %vm532, 1, 0
        %v549 = vsel %vm533, 1, 0
        %v550 = vsel %vm534, 1, 0
        %v551 = vsel %vm535, 1, 0
        %v552 = vsel %vm536, 1, 0
        %v553 = vsel %vm537, 1, 0
        %v554 = vsel %vm538, 1, 0
        %v555 = vsel %vm539, 1, 0
        %v556 = vsel %vm540, 1, 0
        %v557 = vsel %vm541, 1, 0
        %v558 = vsel %vm542, 1, 0
        %v559 = vsel %vm543, 1, 0
        %v560 = vsel %vm544, 1, 0
        %v561 = vcvt.s32.f32 %v545
        %v562 = vcvt.s32.f32 %v546
        %v563 = vcvt.s32.f32 %v547
        %v564 = vcvt.s32.f32 %v548
        %v565 = vcvt.s32.f32 %v549
        %v566 = vcvt.s32.f32 %v550
        %v567 = vcvt.s32.f32 %v551
        %v568 = vcvt.s32.f32 %v552
        %v569 = vcvt.s32.f32 %v553
        %v570 = vcvt.s32.f32 %v554
        %v571 = vcvt.s32.f32 %v555
        %v572 = vcvt.s32.f32 %v556
        %v573 = vcvt.s32.f32 %v557
        %v574 = vcvt.s32.f32 %v558
        %v575 = vcvt.s32.f32 %v559
        %v576 = vcvt.s32.f32 %v560
        %v577 = vld [vmem:[%s1] sm:$0xff]
        %vm578 = vcmask 64512
        %v580 = vsel %vm578, %v561, 0
        %v583 = vsel %vm578, %v562, 0
        %v586 = vsel %vm578, %v563, 0
        %v589 = vsel %vm578, %v564, 0
        %v592 = vsel %vm578, %v565, 0
        %v595 = vsel %vm578, %v566, 0
        %v598 = vsel %vm578, %v567, 0
        %v601 = vsel %vm578, %v568, 0
        %v604 = vsel %vm578, %v569, 0
        %v607 = vsel %vm578, %v570, 0
        %v610 = vsel %vm578, %v571, 0
        %v613 = vsel %vm578, %v572, 0
        %v616 = vsel %vm578, %v573, 0
        %v619 = vsel %vm578, %v574, 0
        %v622 = vsel %vm578, %v575, 0
        %v625 = vsel %vm578, %v576, 0
        %627 = vmatprep.subr.mxu0 0.0
        %628 = vmatpush1.msra.mxu0 0.0
        %629 = vmatprep.subr.mxu0 0.0
        %630 = vmatpush1.msra.mxu0 0.0
        %631 = vmatprep.subr.mxu0 0.0
        %632 = vmatpush1.msra.mxu0 0.0
        %633 = vmatprep.subr.mxu0 0.0
        %634 = vmatpush1.msra.mxu0 0.0
        %635 = vmatprep.subr.mxu0 0.0
        %636 = vmatpush1.msra.mxu0 0.0
        %637 = vmatprep.subr.mxu0 0.0
        %638 = vmatpush1.msra.mxu0 0.0
        %639 = vmatprep.subr.mxu0 0.0
        %640 = vmatpush1.msra.mxu0 0.0
        %641 = vmatprep.subr.mxu0 0.0
        %642 = vmatpush1.msra.mxu0 0.0
        %643 = vmatprep.subr.mxu0 0.0
        %644 = vmatpush1.msra.mxu0 0.0
        %645 = vmatprep.subr.mxu0 0.0
        %646 = vmatpush1.msra.mxu0 0.0
        %647 = vmatprep.subr.mxu0 0.0
        %648 = vmatpush1.msra.mxu0 0.0
        %649 = vmatprep.subr.mxu0 0.0
        %650 = vmatpush1.msra.mxu0 0.0
        %651 = vmatprep.subr.mxu0 0.0
        %652 = vmatpush1.msra.mxu0 0.0
        %653 = vmatprep.subr.mxu0 0.0
        %654 = vmatpush1.msra.mxu0 0.0
        %655 = vmatprep.subr.mxu0 0.0
        %656 = vmatpush1.msra.mxu0 0.0
        %657 = vmatprep.subr.mxu0 0.0
        %658 = vmatpush1.msra.mxu0 %v577
        %659 = vmatprep.subr.mxu0 0.0
        %660 = vmatpush2.msra.mxu0 0.0
        %661 = vmatprep.subr.mxu0 0.0
        %662 = vmatpush2.msra.mxu0 0.0
        %663 = vmatprep.subr.mxu0 0.0
        %664 = vmatpush2.msra.mxu0 0.0
        %665 = vmatprep.subr.mxu0 0.0
        %666 = vmatpush2.msra.mxu0 0.0
        %667 = vmatprep.subr.mxu0 0.0
        %668 = vmatpush2.msra.mxu0 0.0
        %669 = vmatprep.subr.mxu0 0.0
        %670 = vmatpush2.msra.mxu0 0.0
        %671 = vmatprep.subr.mxu0 0.0
        %672 = vmatpush2.msra.mxu0 0.0
        %673 = vmatprep.subr.mxu0 0.0
        %674 = vmatpush2.msra.mxu0 0.0
        %675 = vmatprep.subr.mxu0 0.0
        %676 = vmatpush2.msra.mxu0 0.0
        %677 = vmatprep.subr.mxu0 0.0
        %678 = vmatpush2.msra.mxu0 0.0
        %679 = vmatprep.subr.mxu0 0.0
        %680 = vmatpush2.msra.mxu0 0.0
        %681 = vmatprep.subr.mxu0 0.0
        %682 = vmatpush2.msra.mxu0 0.0
        %683 = vmatprep.subr.mxu0 0.0
        %684 = vmatpush2.msra.mxu0 0.0
        %685 = vmatprep.subr.mxu0 0.0
        %686 = vmatpush2.msra.mxu0 0.0
        %687 = vmatprep.subr.mxu0 0.0
        %688 = vmatpush2.msra.mxu0 0.0
        %689 = vmatprep.subr.mxu0 0.0
        %690 = vmatpush2.msra.mxu0 0.0
        %691 = vmatprep.mubr.f32.mxu0 0.0
        %692 = vmatmul.mubr.f32.gmra.mxu0 %v580
        %v693 = vpop.f32.mrf.mxu0
        %v694 = vadd.f32 0.0, %v693
        %v695 = vpop.f32.mrf.mxu0
        %696 = vmatprep.mubr.f32.mxu0 0.0
        %697 = vmatmul.mubr.f32.gmra.mxu0 %v583
        %v698 = vpop.f32.mrf.mxu0
        %v699 = vadd.f32 0.0, %v698
        %v700 = vpop.f32.mrf.mxu0
        %701 = vmatprep.mubr.f32.mxu0 0.0
        %702 = vmatmul.mubr.f32.gmra.mxu0 %v586
        %v703 = vpop.f32.mrf.mxu0
        %v704 = vadd.f32 0.0, %v703
        %v705 = vpop.f32.mrf.mxu0
        %706 = vmatprep.mubr.f32.mxu0 0.0
        %707 = vmatmul.mubr.f32.gmra.mxu0 %v589
        %v708 = vpop.f32.mrf.mxu0
        %v709 = vadd.f32 0.0, %v708
        %v710 = vpop.f32.mrf.mxu0
        %711 = vmatprep.mubr.f32.mxu0 0.0
        %712 = vmatmul.mubr.f32.gmra.mxu0 %v592
        %v713 = vpop.f32.mrf.mxu0
        %v714 = vadd.f32 0.0, %v713
        %v715 = vpop.f32.mrf.mxu0
        %716 = vmatprep.mubr.f32.mxu0 0.0
        %717 = vmatmul.mubr.f32.gmra.mxu0 %v595
        %v718 = vpop.f32.mrf.mxu0
        %v719 = vadd.f32 0.0, %v718
        %v720 = vpop.f32.mrf.mxu0
        %721 = vmatprep.mubr.f32.mxu0 0.0
        %722 = vmatmul.mubr.f32.gmra.mxu0 %v598
        %v723 = vpop.f32.mrf.mxu0
        %v724 = vadd.f32 0.0, %v723
        %v725 = vpop.f32.mrf.mxu0
        %726 = vmatprep.mubr.f32.mxu0 0.0
        %727 = vmatmul.mubr.f32.gmra.mxu0 %v601
        %v728 = vpop.f32.mrf.mxu0
        %v729 = vadd.f32 0.0, %v728
        %v730 = vpop.f32.mrf.mxu0
        %731 = vmatprep.mubr.f32.mxu0 0.0
        %732 = vmatmul.mubr.f32.gmra.mxu0 %v604
        %v733 = vpop.f32.mrf.mxu0
        %v734 = vadd.f32 0.0, %v733
        %v735 = vpop.f32.mrf.mxu0
        %736 = vmatprep.mubr.f32.mxu0 0.0
        %737 = vmatmul.mubr.f32.gmra.mxu0 %v607
        %v738 = vpop.f32.mrf.mxu0
        %v739 = vadd.f32 0.0, %v738
        %v740 = vpop.f32.mrf.mxu0
        %741 = vmatprep.mubr.f32.mxu0 0.0
        %742 = vmatmul.mubr.f32.gmra.mxu0 %v610
        %v743 = vpop.f32.mrf.mxu0
        %v744 = vadd.f32 0.0, %v743
        %v745 = vpop.f32.mrf.mxu0
        %746 = vmatprep.mubr.f32.mxu0 0.0
        %747 = vmatmul.mubr.f32.gmra.mxu0 %v613
        %v748 = vpop.f32.mrf.mxu0
        %v749 = vadd.f32 0.0, %v748
        %v750 = vpop.f32.mrf.mxu0
        %751 = vmatprep.mubr.f32.mxu0 0.0
        %752 = vmatmul.mubr.f32.gmra.mxu0 %v616
        %v753 = vpop.f32.mrf.mxu0
        %v754 = vadd.f32 0.0, %v753
        %v755 = vpop.f32.mrf.mxu0
        %756 = vmatprep.mubr.f32.mxu0 0.0
        %757 = vmatmul.mubr.f32.gmra.mxu0 %v619
        %v758 = vpop.f32.mrf.mxu0
        %v759 = vadd.f32 0.0, %v758
        %v760 = vpop.f32.mrf.mxu0
        %761 = vmatprep.mubr.f32.mxu0 0.0
        %762 = vmatmul.mubr.f32.gmra.mxu0 %v622
        %v763 = vpop.f32.mrf.mxu0
        %v764 = vadd.f32 0.0, %v763
        %v765 = vpop.f32.mrf.mxu0
        %766 = vmatprep.mubr.f32.mxu0 0.0
        %767 = vmatmul.mubr.f32.gmra.mxu0 %v625
        %v768 = vpop.f32.mrf.mxu0
        %v769 = vadd.f32 0.0, %v768
        %v770 = vpop.f32.mrf.mxu0
        %771 = vdwg.mxu0
        %v772 = vld [vmem:[%s362] sm:$0xff]
        %v773 = vld [vmem:[%s362 + $0x8] sm:$0xff]
        %v774 = vld [vmem:[%s362 + $0x10] sm:$0xff]
        %v775 = vld [vmem:[%s362 + $0x18] sm:$0xff]
        %v776 = vld [vmem:[%s362 + $0x20] sm:$0xff]
        %v777 = vld [vmem:[%s362 + $0x28] sm:$0xff]
        %v778 = vld [vmem:[%s362 + $0x30] sm:$0xff]
        %v779 = vld [vmem:[%s362 + $0x38] sm:$0xff]
        %v780 = vld [vmem:[%s362 + $0x40] sm:$0xff]
        %v781 = vld [vmem:[%s362 + $0x48] sm:$0xff]
        %v782 = vld [vmem:[%s362 + $0x50] sm:$0xff]
        %v783 = vld [vmem:[%s362 + $0x58] sm:$0xff]
        %v784 = vld [vmem:[%s362 + $0x60] sm:$0xff]
        %v785 = vld [vmem:[%s362 + $0x68] sm:$0xff]
        %v786 = vld [vmem:[%s362 + $0x70] sm:$0xff]
        %v787 = vld [vmem:[%s362 + $0x78] sm:$0xff]
        %788 = vmatprep.subr.mxu0 0.0
        %789 = vmatpush1.msra.mxu0 %v787
        %790 = vmatprep.subr.mxu0 0.0
        %791 = vmatpush1.msra.mxu0 %v786
        %792 = vmatprep.subr.mxu0 0.0
        %793 = vmatpush1.msra.mxu0 %v785
        %794 = vmatprep.subr.mxu0 0.0
        %795 = vmatpush1.msra.mxu0 %v784
        %796 = vmatprep.subr.mxu0 0.0
        %797 = vmatpush1.msra.mxu0 %v783
        %798 = vmatprep.subr.mxu0 0.0
        %799 = vmatpush1.msra.mxu0 %v782
        %800 = vmatprep.subr.mxu0 0.0
        %801 = vmatpush1.msra.mxu0 %v781
        %802 = vmatprep.subr.mxu0 0.0
        %803 = vmatpush1.msra.mxu0 %v780
        %804 = vmatprep.subr.mxu0 0.0
        %805 = vmatpush1.msra.mxu0 %v779
        %806 = vmatprep.subr.mxu0 0.0
        %807 = vmatpush1.msra.mxu0 %v778
        %808 = vmatprep.subr.mxu0 0.0
        %809 = vmatpush1.msra.mxu0 %v777
        %810 = vmatprep.subr.mxu0 0.0
        %811 = vmatpush1.msra.mxu0 %v776
        %812 = vmatprep.subr.mxu0 0.0
        %813 = vmatpush1.msra.mxu0 %v775
        %814 = vmatprep.subr.mxu0 0.0
        %815 = vmatpush1.msra.mxu0 %v774
        %816 = vmatprep.subr.mxu0 0.0
        %817 = vmatpush1.msra.mxu0 %v773
        %818 = vmatprep.subr.mxu0 0.0
        %819 = vmatpush1.msra.mxu0 %v772
        %820 = vmatprep.subr.mxu0 0.0
        %821 = vmatpush2.msra.mxu0 0.0
        %822 = vmatprep.subr.mxu0 0.0
        %823 = vmatpush2.msra.mxu0 0.0
        %824 = vmatprep.subr.mxu0 0.0
        %825 = vmatpush2.msra.mxu0 0.0
        %826 = vmatprep.subr.mxu0 0.0
        %827 = vmatpush2.msra.mxu0 0.0
        %828 = vmatprep.subr.mxu0 0.0
        %829 = vmatpush2.msra.mxu0 0.0
        %830 = vmatprep.subr.mxu0 0.0
        %831 = vmatpush2.msra.mxu0 0.0
        %832 = vmatprep.subr.mxu0 0.0
        %833 = vmatpush2.msra.mxu0 0.0
        %834 = vmatprep.subr.mxu0 0.0
        %835 = vmatpush2.msra.mxu0 0.0
        %836 = vmatprep.subr.mxu0 0.0
        %837 = vmatpush2.msra.mxu0 0.0
        %838 = vmatprep.subr.mxu0 0.0
        %839 = vmatpush2.msra.mxu0 0.0
        %840 = vmatprep.subr.mxu0 0.0
        %841 = vmatpush2.msra.mxu0 0.0
        %842 = vmatprep.subr.mxu0 0.0
        %843 = vmatpush2.msra.mxu0 0.0
        %844 = vmatprep.subr.mxu0 0.0
        %845 = vmatpush2.msra.mxu0 0.0
        %846 = vmatprep.subr.mxu0 0.0
        %847 = vmatpush2.msra.mxu0 0.0
        %848 = vmatprep.subr.mxu0 0.0
        %849 = vmatpush2.msra.mxu0 0.0
        %850 = vmatprep.subr.mxu0 0.0
        %851 = vmatpush2.msra.mxu0 0.0
        %852 = vmatprep.mubr.f32.mxu0 0.0
        %853 = vmatmul.mubr.f32.gmra.mxu0 %v694
        %v854 = vpop.f32.mrf.mxu0
        %v855 = vadd.f32 0.0, %v854
        %v856 = vpop.f32.mrf.mxu0
        %857 = vmatprep.mubr.f32.mxu0 0.0
        %858 = vmatmul.mubr.f32.gmra.mxu0 %v699
        %v859 = vpop.f32.mrf.mxu0
        %v860 = vadd.f32 0.0, %v859
        %v861 = vpop.f32.mrf.mxu0
        %862 = vmatprep.mubr.f32.mxu0 0.0
        %863 = vmatmul.mubr.f32.gmra.mxu0 %v704
        %v864 = vpop.f32.mrf.mxu0
        %v865 = vadd.f32 0.0, %v864
        %v866 = vpop.f32.mrf.mxu0
        %867 = vmatprep.mubr.f32.mxu0 0.0
        %868 = vmatmul.mubr.f32.gmra.mxu0 %v709
        %v869 = vpop.f32.mrf.mxu0
        %v870 = vadd.f32 0.0, %v869
        %v871 = vpop.f32.mrf.mxu0
        %872 = vmatprep.mubr.f32.mxu0 0.0
        %873 = vmatmul.mubr.f32.gmra.mxu0 %v714
        %v874 = vpop.f32.mrf.mxu0
        %v875 = vadd.f32 0.0, %v874
        %v876 = vpop.f32.mrf.mxu0
        %877 = vmatprep.mubr.f32.mxu0 0.0
        %878 = vmatmul.mubr.f32.gmra.mxu0 %v719
        %v879 = vpop.f32.mrf.mxu0
        %v880 = vadd.f32 0.0, %v879
        %v881 = vpop.f32.mrf.mxu0
        %882 = vmatprep.mubr.f32.mxu0 0.0
        %883 = vmatmul.mubr.f32.gmra.mxu0 %v724
        %v884 = vpop.f32.mrf.mxu0
        %v885 = vadd.f32 0.0, %v884
        %v886 = vpop.f32.mrf.mxu0
        %887 = vmatprep.mubr.f32.mxu0 0.0
        %888 = vmatmul.mubr.f32.gmra.mxu0 %v729
        %v889 = vpop.f32.mrf.mxu0
        %v890 = vadd.f32 0.0, %v889
        %v891 = vpop.f32.mrf.mxu0
        %892 = vmatprep.mubr.f32.mxu0 0.0
        %893 = vmatmul.mubr.f32.gmra.mxu0 %v734
        %v894 = vpop.f32.mrf.mxu0
        %v895 = vadd.f32 0.0, %v894
        %v896 = vpop.f32.mrf.mxu0
        %897 = vmatprep.mubr.f32.mxu0 0.0
        %898 = vmatmul.mubr.f32.gmra.mxu0 %v739
        %v899 = vpop.f32.mrf.mxu0
        %v900 = vadd.f32 0.0, %v899
        %v901 = vpop.f32.mrf.mxu0
        %902 = vmatprep.mubr.f32.mxu0 0.0
        %903 = vmatmul.mubr.f32.gmra.mxu0 %v744
        %v904 = vpop.f32.mrf.mxu0
        %v905 = vadd.f32 0.0, %v904
        %v906 = vpop.f32.mrf.mxu0
        %907 = vmatprep.mubr.f32.mxu0 0.0
        %908 = vmatmul.mubr.f32.gmra.mxu0 %v749
        %v909 = vpop.f32.mrf.mxu0
        %v910 = vadd.f32 0.0, %v909
        %v911 = vpop.f32.mrf.mxu0
        %912 = vmatprep.mubr.f32.mxu0 0.0
        %913 = vmatmul.mubr.f32.gmra.mxu0 %v754
        %v914 = vpop.f32.mrf.mxu0
        %v915 = vadd.f32 0.0, %v914
        %v916 = vpop.f32.mrf.mxu0
        %917 = vmatprep.mubr.f32.mxu0 0.0
        %918 = vmatmul.mubr.f32.gmra.mxu0 %v759
        %v919 = vpop.f32.mrf.mxu0
        %v920 = vadd.f32 0.0, %v919
        %v921 = vpop.f32.mrf.mxu0
        %922 = vmatprep.mubr.f32.mxu0 0.0
        %923 = vmatmul.mubr.f32.gmra.mxu0 %v764
        %v924 = vpop.f32.mrf.mxu0
        %v925 = vadd.f32 0.0, %v924
        %v926 = vpop.f32.mrf.mxu0
        %927 = vmatprep.mubr.f32.mxu0 0.0
        %928 = vmatmul.mubr.f32.gmra.mxu0 %v769
        %v929 = vpop.f32.mrf.mxu0
        %v930 = vadd.f32 0.0, %v929
        %v931 = vpop.f32.mrf.mxu0
        %932 = vdwg.mxu0
        %v933 = vlaneseq
        %v934 = vshrl.u32 %v933, 7
        %v935 = vld [vmem:[%s356] sm:$0x1]
        %v936 = vlaneseq
        %v937 = vshrl.u32 %v936, 7
        %v938 = vsub.s32 0, %v937
        %v939 = vrot.slane %v935, %v938
        %vm940 = vcmp.eq.s32.totalorder %v934, %v939
        %v941 = vld [vmem:[%s305] sm:$0x1]
        %v943 = vlaneseq
        %v944 = vshrl.u32 %v943, 7
        %v945 = vsub.s32 0, %v944
        %v946 = vrot.slane %v941, %v945
        %v948 = vsel %vm940, %v946, 0.0
        %v949 = vld [vmem:[#allocation9] sm:$0xff]
        %950 = vmatprep.subr.mxu0 0.0
        %951 = vmatpush1.msra.mxu0 %v930
        %952 = vmatprep.subr.mxu0 0.0
        %953 = vmatpush1.msra.mxu0 %v925
        %954 = vmatprep.subr.mxu0 0.0
        %955 = vmatpush1.msra.mxu0 %v920
        %956 = vmatprep.subr.mxu0 0.0
        %957 = vmatpush1.msra.mxu0 %v915
        %958 = vmatprep.subr.mxu0 0.0
        %959 = vmatpush1.msra.mxu0 %v910
        %960 = vmatprep.subr.mxu0 0.0
        %961 = vmatpush1.msra.mxu0 %v905
        %962 = vmatprep.subr.mxu0 0.0
        %963 = vmatpush1.msra.mxu0 %v900
        %964 = vmatprep.subr.mxu0 0.0
        %965 = vmatpush1.msra.mxu0 %v895
        %966 = vmatprep.subr.mxu0 0.0
        %967 = vmatpush1.msra.mxu0 %v890
        %968 = vmatprep.subr.mxu0 0.0
        %969 = vmatpush1.msra.mxu0 %v885
        %970 = vmatprep.subr.mxu0 0.0
        %971 = vmatpush1.msra.mxu0 %v880
        %972 = vmatprep.subr.mxu0 0.0
        %973 = vmatpush1.msra.mxu0 %v875
        %974 = vmatprep.subr.mxu0 0.0
        %975 = vmatpush1.msra.mxu0 %v870
        %976 = vmatprep.subr.mxu0 0.0
        %977 = vmatpush1.msra.mxu0 %v865
        %978 = vmatprep.subr.mxu0 0.0
        %979 = vmatpush1.msra.mxu0 %v860
        %980 = vmatprep.subr.mxu0 0.0
        %981 = vmatpush1.msra.mxu0 %v855
        %982 = vmatprep.subr.mxu0 0.0
        %983 = vmatpush2.msra.mxu0 0.0
        %984 = vmatprep.subr.mxu0 0.0
        %985 = vmatpush2.msra.mxu0 0.0
        %986 = vmatprep.subr.mxu0 0.0
        %987 = vmatpush2.msra.mxu0 0.0
        %988 = vmatprep.subr.mxu0 0.0
        %989 = vmatpush2.msra.mxu0 0.0
        %990 = vmatprep.subr.mxu0 0.0
        %991 = vmatpush2.msra.mxu0 0.0
        %992 = vmatprep.subr.mxu0 0.0
        %993 = vmatpush2.msra.mxu0 0.0
        %994 = vmatprep.subr.mxu0 0.0
        %995 = vmatpush2.msra.mxu0 0.0
        %996 = vmatprep.subr.mxu0 0.0
        %997 = vmatpush2.msra.mxu0 0.0
        %998 = vmatprep.subr.mxu0 0.0
        %999 = vmatpush2.msra.mxu0 0.0
        %1000 = vmatprep.subr.mxu0 0.0
        %1001 = vmatpush2.msra.mxu0 0.0
        %1002 = vmatprep.subr.mxu0 0.0
        %1003 = vmatpush2.msra.mxu0 0.0
        %1004 = vmatprep.subr.mxu0 0.0
        %1005 = vmatpush2.msra.mxu0 0.0
        %1006 = vmatprep.subr.mxu0 0.0
        %1007 = vmatpush2.msra.mxu0 0.0
        %1008 = vmatprep.subr.mxu0 0.0
        %1009 = vmatpush2.msra.mxu0 0.0
        %1010 = vmatprep.subr.mxu0 0.0
        %1011 = vmatpush2.msra.mxu0 0.0
        %1012 = vmatprep.subr.mxu0 0.0
        %1013 = vmatpush2.msra.mxu0 0.0
        %1014 = vmatprep.mubr.f32.mxu0 0.0
        %1015 = vmatmul.mubr.f32.gmra.mxu0 %v948
        %v1016 = vpop.f32.mrf.mxu0
        %v1017 = vadd.f32 0.0, %v1016
        %v1018 = vpop.f32.mrf.mxu0
        %1019 = vdwg.mxu0
        %v1020 = vadd.f32 %v949, %v1017
        %1021 = vst [vmem:[#allocation9] sm:$0xff] %v1020
        // Predicated region
        $region61: #{tpu_custom_call.1} parent=47 // pred_check
          %p1022 = pneg %p212
        $region62: #{tpu_custom_call.1} parent=47 // pred_check_branch
          %1024 = sbr.rel (%p1022) target = $region64
        $region63: #{tpu_custom_call.1} parent=47 // pred_region
          %s1026 = ssub.s32 128, 128
          %1027 = vsyncadd [#allocation6], %s1026
          %s1029 = sshll.u32 [#allocation9], 4
          %s1030 = int_to_ptr.vmem [resolvable:$true] %s1029
          %1032 = dma.vmem_to_hbm [thread:$0]  %s1030, 128, %s8, [#allocation6]
        $region64: #{tpu_custom_call.1} parent=47 // pred_fallthru
          _
        // Predicated region
        $region65: #{tpu_custom_call.1} parent=47 // pred_check
          %p1033 = pneg %p212
        $region66: #{tpu_custom_call.1} parent=47 // pred_check_branch
          %1035 = sbr.rel (%p1033) target = $region68
        $region67: #{tpu_custom_call.1} parent=47 // pred_region
          %1036 = dma.done [#allocation6], 128
        $region68: #{tpu_custom_call.1} parent=47 // pred_fallthru
          _
      $region48: #{tpu_custom_call.1} parent=5 // pred_fallthru
        _
      %p1037 = scmp.le.s32.totalorder 2, %s25
      // Predicated region
      $region69: #{tpu_custom_call.1} parent=5 // pred_check
        %p1038 = pneg %p1037
      $region70: #{tpu_custom_call.1} parent=5 // pred_check_branch
        %1040 = sbr.rel (%p1038) target = $region72
      $region71: #{tpu_custom_call.1} parent=5 // pred_region
        %s1041 = ssub.s32 %s25, 2
      $region72: #{tpu_custom_call.1} parent=5 // pred_fallthru
        _
    $region6: #{tpu_custom_call.1} parent=1 // loop_footer
      %s29 = sadd.s32 1, %s25
    $region7: #{tpu_custom_call.1} parent=1 // loop_footer_branch
      %24 = sbr.rel target = $region3
    $region8: #{tpu_custom_call.1} parent=1 // loop_exit
      _
    %1042 = vsyncpa [#allocation5], 1
    %s1043 = scalar_lea.sflag [#allocation5], 1
    %1044 = vsyncpa %s1043, 1
    %1045 = vsyncpa [#allocation8], 1
    %1046 = vsyncpa [#allocation6], 1
    %s1047 = scalar_lea.sflag [#allocation6], 1
    %1048 = vsyncpa %s1047, 1

</llo_original>
